<compile_context>
chip_gen: v7x
topology: tpu7x:2x2x1
jax: 0.10.0
libtpu: 0.0.40
codegen_flags: <defaults>
</compile_context>

<pallas_src>
import functools

import jax
import jax.numpy as jnp
from jax import lax
from jax.experimental import pallas as pl
from jax.experimental.pallas import tpu as pltpu

ALPHA = 0.5
TEMPERATURE = 4.0

# Byte model for tile sizing: per tile element we keep live
#   2 logit inputs x 2 pipeline buffers (input dtype)  +  ~8 f32 temporaries
# (z_s, z_sT, e_sT, z_tT, e_tT, e_s, col iota, where-product).
_LIVE_F32_TEMPS = 8
_VMEM_FRACTION = 0.75                      # scoped limit as fraction of physical
_FALLBACK_VMEM_BYTES = 64 * 1024 * 1024    # assume v7x (smallest VMEM) if query fails


def _vmem_capacity_bytes():
    try:
        info = pltpu.get_tpu_info()
        cap = getattr(info, "vmem_capacity_bytes", None)
        if cap:
            return int(cap)
    except Exception:
        pass
    return _FALLBACK_VMEM_BYTES


def _round_up(x, m):
    return ((x + m - 1) // m) * m


def _int_temperature(t):
    """Return T as a small positive int if exp(z) == exp(z/T)**T is usable."""
    ft = float(t)
    if ft.is_integer() and 1 <= ft <= 64:
        return int(ft)
    return None


def _int_pow(x, n):
    """x**n for a small static positive int n, via squaring on the VPU."""
    acc = None
    while n:
        if n & 1:
            acc = x if acc is None else acc * x
        n >>= 1
        if n:
            x = x * x
    return acc


# ----------------------------------------------------------------------------
# Whole-row kernel: C untiled, batch tiled.
# ----------------------------------------------------------------------------
def _rowwise_kernel(student_ref, teacher_ref, labels_ref, out_ref, *,
                    alpha, temperature, int_t):
    s = student_ref[...].astype(jnp.float32)       # (TB, C)
    t = teacher_ref[...].astype(jnp.float32)       # (TB, C)
    labels = labels_ref[...]                       # (TB, 1) int32
    tb, c = s.shape
    temp = temperature
    inv_t = 1.0 / temp

    # Student: shared row max for T-scaled and raw softmaxes (max(s/T)=max(s)/T).
    m_s = jnp.max(s, axis=1, keepdims=True)
    z_s = s - m_s
    z_st = z_s * inv_t
    e_st = jnp.exp(z_st)                                           # EUP pass 1
    lse_st = jnp.log(jnp.sum(e_st, axis=1, keepdims=True))

    # Teacher (temperature-scaled).
    m_t = jnp.max(t, axis=1, keepdims=True)
    z_tt = (t - m_t) * inv_t
    e_tt = jnp.exp(z_tt)                                           # EUP pass 2
    sum_tt = jnp.sum(e_tt, axis=1, keepdims=True)
    lse_tt = jnp.log(sum_tt)

    # KL per row, fully fused (uses sum_j p_t = 1; no (TB,C) log_p temporaries):
    #   kl = (1/sum_tt) * sum_j e_tt*(z_tt - z_st) - lse_tt + lse_st
    w = jnp.sum(e_tt * (z_tt - z_st), axis=1, keepdims=True)
    kl_row = w / sum_tt - lse_tt + lse_st

    # CE per row on raw logits.  exp(z_s) = exp(z_s/T)**T -> no third EUP pass.
    if int_t is not None:
        e_s = _int_pow(e_st, int_t)
    else:
        e_s = jnp.exp(z_s)
    lse_s = jnp.log(jnp.sum(e_s, axis=1, keepdims=True))
    col = lax.broadcasted_iota(jnp.int32, (tb, c), 1)
    z_at_label = jnp.sum(jnp.where(col == labels, z_s, 0.0), axis=1,
                         keepdims=True)
    ce_row = lse_s - z_at_label

    out_ref[...] = (alpha * temp * temp) * kl_row + (1.0 - alpha) * ce_row


# ----------------------------------------------------------------------------
# Class-tiled kernel: online logsumexp over class blocks (vocab-scale C).
# ----------------------------------------------------------------------------
def _class_tiled_kernel(student_ref, teacher_ref, labels_ref, out_ref,
                        m_s_ref, m_t_ref, l_st_ref, l_tt_ref, l_s_ref,
                        w_ref, s_lab_ref, *,
                        alpha, temperature, int_t, num_classes, block_cols,
                        mask_cols):
    j = pl.program_id(1)
    nj = pl.num_programs(1)
    temp = temperature
    inv_t = 1.0 / temp
    neg = jnp.float32(-3.0e38)   # finite sentinel: exp(neg/T) == 0, no inf*0 NaN

    @pl.when(j == 0)
    def _():
        m_s_ref[...] = jnp.full_like(m_s_ref, neg)
        m_t_ref[...] = jnp.full_like(m_t_ref, neg)
        l_st_ref[...] = jnp.zeros_like(l_st_ref)
        l_tt_ref[...] = jnp.zeros_like(l_tt_ref)
        l_s_ref[...] = jnp.zeros_like(l_s_ref)
        w_ref[...] = jnp.zeros_like(w_ref)
        s_lab_ref[...] = jnp.zeros_like(s_lab_ref)

    s = student_ref[...].astype(jnp.float32)       # (TB, TC)
    t = teacher_ref[...].astype(jnp.float32)
    labels = labels_ref[...]                       # (TB, 1)
    tb, tc = s.shape

    col = lax.broadcasted_iota(jnp.int32, (tb, tc), 1) + j * block_cols
    if mask_cols:
        valid = col < num_classes
        s = jnp.where(valid, s, neg)
        t = jnp.where(valid, t, neg)

    m_s_old = m_s_ref[...]
    m_t_old = m_t_ref[...]
    m_s_new = jnp.maximum(m_s_old, jnp.max(s, axis=1, keepdims=True))
    m_t_new = jnp.maximum(m_t_old, jnp.max(t, axis=1, keepdims=True))

    a_st = jnp.exp((m_s_old - m_s_new) * inv_t)
    a_tt = jnp.exp((m_t_old - m_t_new) * inv_t)

    z_st = (s - m_s_new) * inv_t
    z_tt = (t - m_t_new) * inv_t
    e_st = jnp.exp(z_st)                           # EUP pass 1
    e_tt = jnp.exp(z_tt)                           # EUP pass 2
    if int_t is not None:
        e_s = _int_pow(e_st, int_t)                # exp(s - m) without 3rd exp
        a_s = _int_pow(a_st, int_t)
    else:
        e_s = jnp.exp(s - m_s_new)
        a_s = jnp.exp(m_s_old - m_s_new)

    sum_st = jnp.sum(e_st, axis=1, keepdims=True)
    sum_tt = jnp.sum(e_tt, axis=1, keepdims=True)
    sum_s = jnp.sum(e_s, axis=1, keepdims=True)
    w_blk = jnp.sum(e_tt * (z_tt - z_st), axis=1, keepdims=True)

    # Flash-style rescaling of the running weighted sum when either max improves.
    l_tt_old = l_tt_ref[...]
    delta = ((m_t_old - m_t_new) - (m_s_old - m_s_new)) * inv_t
    w_ref[...] = a_tt * (w_ref[...] + delta * l_tt_old) + w_blk
    l_tt_ref[...] = a_tt * l_tt_old + sum_tt
    l_st_ref[...] = a_st * l_st_ref[...] + sum_st
    l_s_ref[...] = a_s * l_s_ref[...] + sum_s
    m_s_ref[...] = m_s_new
    m_t_ref[...] = m_t_new

    # The label column lives in exactly one class block: accumulate raw s[label].
    s_lab_ref[...] += jnp.sum(jnp.where(col == labels, s, 0.0), axis=1,
                              keepdims=True)

    @pl.when(j == nj - 1)
    def _():
        lse_st = jnp.log(l_st_ref[...])
        lse_tt = jnp.log(l_tt_ref[...])
        lse_s = jnp.log(l_s_ref[...])
        kl_row = w_ref[...] / l_tt_ref[...] - lse_tt + lse_st
        ce_row = lse_s - (s_lab_ref[...] - m_s_ref[...])
        out_ref[...] = (alpha * temp * temp) * kl_row + (1.0 - alpha) * ce_row


# ----------------------------------------------------------------------------
# Tiling plan + wrapper
# ----------------------------------------------------------------------------
def _plan_tiles(batch, num_classes, in_itemsize, vmem_limit_bytes, sublane):
    bytes_per_elem = 4 * in_itemsize + 4 * _LIVE_F32_TEMPS
    budget = max(vmem_limit_bytes, 2 * 1024 * 1024)

    rows_full_c = budget // (bytes_per_elem * num_classes)
    if rows_full_c >= sublane:
        # -------- whole-row path (C untiled) --------
        if rows_full_c >= batch:
            if batch >= 2 * sublane:
                # Megacore: keep >= 2 row blocks so both TensorCores get work.
                tb = _round_up(-(-batch // 2), sublane)
                if tb >= batch:
                    tb = batch
            else:
                tb = batch
        else:
            tb = max(sublane, (rows_full_c // sublane) * sublane)
        return int(tb), None

    # -------- vocab-scale path: tile the class axis (online logsumexp) --------
    tb = sublane
    cols = budget // (bytes_per_elem * tb)
    tc = max(128, (cols // 128) * 128)
    tc = min(tc, _round_up(num_classes, 128))
    return int(tb), int(tc)


def distillation_loss(student_logits, teacher_logits, labels, *,
                      alpha=ALPHA, temperature=TEMPERATURE,
                      block_rows=None, block_cols=None):
    B, C = student_logits.shape
    assert teacher_logits.shape == (B, C)
    labels2d = labels.astype(jnp.int32).reshape(B, 1)

    in_itemsize = jnp.dtype(student_logits.dtype).itemsize
    sublane = max(8, 32 // in_itemsize)          # 8 for f32, 16 for bf16 packing
    vmem_limit = int(_vmem_capacity_bytes() * _VMEM_FRACTION)

    tb_auto, tc_auto = _plan_tiles(B, C, in_itemsize, vmem_limit, sublane)
    tb = tb_auto if block_rows is None else int(block_rows)
    tc = tc_auto if block_cols is None else int(block_cols)

    if tb >= B:
        tb = B
    else:
        tb = max(sublane, (tb // sublane) * sublane)
    num_row_blocks = pl.cdiv(B, tb)

    cost = pl.CostEstimate(
        flops=22 * B * C,
        transcendentals=2 * B * C,
        bytes_accessed=2 * B * C * in_itemsize + 8 * B,
    )
    int_t = _int_temperature(temperature)

    if tc is None or tc >= C:
        # --------------------- whole-row path ---------------------
        kernel = functools.partial(
            _rowwise_kernel, alpha=float(alpha), temperature=float(temperature),
            int_t=int_t)
        per_row = pl.pallas_call(
            kernel,
            out_shape=jax.ShapeDtypeStruct((B, 1), jnp.float32),
            grid=(num_row_blocks,),
            in_specs=[
                pl.BlockSpec((tb, C), lambda i: (i, 0)),
                pl.BlockSpec((tb, C), lambda i: (i, 0)),
                pl.BlockSpec((tb, 1), lambda i: (i, 0)),
            ],
            out_specs=pl.BlockSpec((tb, 1), lambda i: (i, 0)),
            compiler_params=pltpu.CompilerParams(
                dimension_semantics=("parallel",),
                vmem_limit_bytes=vmem_limit),
            cost_estimate=cost,
        )(student_logits, teacher_logits, labels2d)
    else:
        # --------------------- class-tiled path ---------------------
        tc = max(128, (tc // 128) * 128)
        num_class_blocks = pl.cdiv(C, tc)
        kernel = functools.partial(
            _class_tiled_kernel, alpha=float(alpha),
            temperature=float(temperature), int_t=int_t,
            num_classes=C, block_cols=tc, mask_cols=(C % tc != 0))
        per_row = pl.pallas_call(
            kernel,
            out_shape=jax.ShapeDtypeStruct((B, 1), jnp.float32),
            grid=(num_row_blocks, num_class_blocks),
            in_specs=[
                pl.BlockSpec((tb, tc), lambda i, j: (i, j)),
                pl.BlockSpec((tb, tc), lambda i, j: (i, j)),
                pl.BlockSpec((tb, 1), lambda i, j: (i, 0)),
            ],
            out_specs=pl.BlockSpec((tb, 1), lambda i, j: (i, 0)),
            scratch_shapes=[pltpu.VMEM((tb, 1), jnp.float32)] * 7,
            compiler_params=pltpu.CompilerParams(
                dimension_semantics=("parallel", "arbitrary"),
                vmem_limit_bytes=vmem_limit),
            cost_estimate=cost,
        )(student_logits, teacher_logits, labels2d)

    # Tiny (B,) reduction outside the kernel: batchmean KL + mean CE both fold
    # into a single mean over per-row combined contributions.
    return jnp.mean(per_row)


# ----------------------------------------------------------------------------
# Pure-JAX reference mirroring the PyTorch module.
# ----------------------------------------------------------------------------
def _reference_loss(student_logits, teacher_logits, labels,
                    alpha=ALPHA, temperature=TEMPERATURE):
    T = temperature
    B, C = student_logits.shape
    log_p_s = jax.nn.log_softmax(student_logits.astype(jnp.float32) / T, axis=1)
    p_t = jax.nn.softmax(teacher_logits.astype(jnp.float32) / T, axis=1)
    kl = jnp.sum(p_t * (jnp.log(p_t) - log_p_s)) / B * T * T
    log_sm = jax.nn.log_softmax(student_logits.astype(jnp.float32), axis=1)
    ce = -jnp.mean(jnp.take_along_axis(log_sm, labels[:, None], axis=1))
    return alpha * kl + (1.0 - alpha) * ce


if __name__ == "__main__":
    # --- primary small test: batch=8, num_classes=32 (single block) ----------
    k1, k2, k3 = jax.random.split(jax.random.PRNGKey(0), 3)
    B, C = 8, 32
    student = jax.random.normal(k1, (B, C), dtype=jnp.float32)
    teacher = jax.random.normal(k2, (B, C), dtype=jnp.float32)
    labels = jax.random.randint(k3, (B,), 0, C, dtype=jnp.int32)
    loss = distillation_loss(student, teacher, labels)
    jax.block_until_ready(loss)
    ref = _reference_loss(student, teacher, labels)
    assert jnp.allclose(loss, ref, rtol=1e-5, atol=1e-5), (loss, ref)

    # --- batch-tiled test (multiple row blocks, partial tail block) ----------
    k4, k5, k6 = jax.random.split(jax.random.PRNGKey(1), 3)
    B2, C2 = 40, 128
    student2 = jax.random.normal(k4, (B2, C2), dtype=jnp.float32)
    teacher2 = jax.random.normal(k5, (B2, C2), dtype=jnp.float32)
    labels2 = jax.random.randint(k6, (B2,), 0, C2, dtype=jnp.int32)
    loss2 = distillation_loss(student2, teacher2, labels2, block_rows=16)
    jax.block_until_ready(loss2)
    ref2 = _reference_loss(student2, teacher2, labels2)
    assert jnp.allclose(loss2, ref2, rtol=1e-5, atol=1e-5), (loss2, ref2)

    # --- class-tiled (online logsumexp) path, C % block_cols == 0 ------------
    k7, k8, k9 = jax.random.split(jax.random.PRNGKey(2), 3)
    B3, C3 = 24, 384
    student3 = jax.random.normal(k7, (B3, C3), dtype=jnp.float32)
    teacher3 = jax.random.normal(k8, (B3, C3), dtype=jnp.float32)
    labels3 = jax.random.randint(k9, (B3,), 0, C3, dtype=jnp.int32)
    loss3 = distillation_loss(student3, teacher3, labels3,
                              block_rows=8, block_cols=128)
    jax.block_until_ready(loss3)
    ref3 = _reference_loss(student3, teacher3, labels3)
    assert jnp.allclose(loss3, ref3, rtol=1e-5, atol=1e-5), (loss3, ref3)

    # --- class-tiled path with ragged last class block (column masking) ------
    k10, k11, k12 = jax.random.split(jax.random.PRNGKey(3), 3)
    B4, C4 = 12, 200
    student4 = jax.random.normal(k10, (B4, C4), dtype=jnp.float32)
    teacher4 = jax.random.normal(k11, (B4, C4), dtype=jnp.float32)
    labels4 = jax.random.randint(k12, (B4,), 0, C4, dtype=jnp.int32)
    loss4 = distillation_loss(student4, teacher4, labels4,
                              block_rows=8, block_cols=128)
    jax.block_until_ready(loss4)
    ref4 = _reference_loss(student4, teacher4, labels4)
    assert jnp.allclose(loss4, ref4, rtol=1e-5, atol=1e-5), (loss4, ref4)

    print("KERNEL_OK")
</pallas_src>

<mosaic_0001>
module attributes {stable_mosaic.version = 11 : i64} {
  func.func @_rowwise_kernel(%arg0: i32, %arg1: memref<8x32xf32, #tpu.memory_space<vmem>>, %arg2: memref<8x32xf32, #tpu.memory_space<vmem>>, %arg3: memref<8x1xi32, #tpu.memory_space<vmem>>, %arg4: memref<8x1xf32, #tpu.memory_space<vmem>>) attributes {dimension_semantics = [#tpu.dimension_semantics<parallel>], iteration_bounds = array<i64: 1>, scalar_prefetch = 0 : i64, scratch_operands = 0 : i64, tpu.core_type = #tpu.core_type<tc>, window_params = [{transform_indices = @transform_0, window_bounds = array<i64: 8, 32>}, {transform_indices = @transform_1, window_bounds = array<i64: 8, 32>}, {transform_indices = @transform_2, window_bounds = array<i64: 8, 1>}, {transform_indices = @transform_3, window_bounds = array<i64: 8, 1>}]} {
    %c0 = arith.constant 0 : index
    %c0_0 = arith.constant 0 : index
    %0 = vector.load %arg1[%c0, %c0_0] : memref<8x32xf32, #tpu.memory_space<vmem>>, vector<8x32xf32>
    %c0_1 = arith.constant 0 : index
    %c0_2 = arith.constant 0 : index
    %1 = vector.load %arg2[%c0_1, %c0_2] : memref<8x32xf32, #tpu.memory_space<vmem>>, vector<8x32xf32>
    %c0_3 = arith.constant 0 : index
    %c0_4 = arith.constant 0 : index
    %2 = vector.load %arg3[%c0_3, %c0_4] : memref<8x1xi32, #tpu.memory_space<vmem>>, vector<8x1xi32>
    %cst = arith.constant dense<0xFF800000> : vector<8xf32>
    %3 = vector.multi_reduction <maximumf>, %0, %cst [1] : vector<8x32xf32> to vector<8xf32>
    %4 = vector.shape_cast %3 : vector<8xf32> to vector<8x1xf32>
    %5 = vector.broadcast %4 : vector<8x1xf32> to vector<8x32xf32>
    %6 = arith.subf %0, %5 : vector<8x32xf32>
    %cst_5 = arith.constant 2.500000e-01 : f32
    %7 = vector.broadcast %cst_5 : f32 to vector<8x32xf32>
    %8 = arith.mulf %6, %7 : vector<8x32xf32>
    %9 = math.exp %8 : vector<8x32xf32>
    %cst_6 = arith.constant dense<0.000000e+00> : vector<8xf32>
    %10 = vector.multi_reduction <add>, %9, %cst_6 [1] : vector<8x32xf32> to vector<8xf32>
    %11 = vector.shape_cast %10 : vector<8xf32> to vector<8x1xf32>
    %12 = math.log %11 : vector<8x1xf32>
    %cst_7 = arith.constant dense<0xFF800000> : vector<8xf32>
    %13 = vector.multi_reduction <maximumf>, %1, %cst_7 [1] : vector<8x32xf32> to vector<8xf32>
    %14 = vector.shape_cast %13 : vector<8xf32> to vector<8x1xf32>
    %15 = vector.broadcast %14 : vector<8x1xf32> to vector<8x32xf32>
    %16 = arith.subf %1, %15 : vector<8x32xf32>
    %cst_8 = arith.constant 2.500000e-01 : f32
    %17 = vector.broadcast %cst_8 : f32 to vector<8x32xf32>
    %18 = arith.mulf %16, %17 : vector<8x32xf32>
    %19 = math.exp %18 : vector<8x32xf32>
    %cst_9 = arith.constant dense<0.000000e+00> : vector<8xf32>
    %20 = vector.multi_reduction <add>, %19, %cst_9 [1] : vector<8x32xf32> to vector<8xf32>
    %21 = vector.shape_cast %20 : vector<8xf32> to vector<8x1xf32>
    %22 = math.log %21 : vector<8x1xf32>
    %23 = arith.subf %18, %8 : vector<8x32xf32>
    %24 = arith.mulf %19, %23 : vector<8x32xf32>
    %cst_10 = arith.constant dense<0.000000e+00> : vector<8xf32>
    %25 = vector.multi_reduction <add>, %24, %cst_10 [1] : vector<8x32xf32> to vector<8xf32>
    %26 = vector.shape_cast %25 : vector<8xf32> to vector<8x1xf32>
    %27 = arith.divf %26, %21 : vector<8x1xf32>
    %28 = arith.subf %27, %22 : vector<8x1xf32>
    %29 = arith.addf %28, %12 : vector<8x1xf32>
    %30 = arith.mulf %9, %9 : vector<8x32xf32>
    %31 = arith.mulf %30, %30 : vector<8x32xf32>
    %cst_11 = arith.constant dense<0.000000e+00> : vector<8xf32>
    %32 = vector.multi_reduction <add>, %31, %cst_11 [1] : vector<8x32xf32> to vector<8xf32>
    %33 = vector.shape_cast %32 : vector<8xf32> to vector<8x1xf32>
    %34 = math.log %33 : vector<8x1xf32>
    %35 = tpu.iota {dimensions = array<i32: 1>} : vector<8x32xi32>
    %36 = vector.broadcast %2 : vector<8x1xi32> to vector<8x32xi32>
    %37 = arith.cmpi eq, %35, %36 : vector<8x32xi32>
    %cst_12 = arith.constant 0.000000e+00 : f32
    %38 = vector.broadcast %cst_12 : f32 to vector<8x32xf32>
    %39 = arith.select %37, %6, %38 : vector<8x32xi1>, vector<8x32xf32>
    %cst_13 = arith.constant dense<0.000000e+00> : vector<8xf32>
    %40 = vector.multi_reduction <add>, %39, %cst_13 [1] : vector<8x32xf32> to vector<8xf32>
    %41 = vector.shape_cast %40 : vector<8xf32> to vector<8x1xf32>
    %42 = arith.subf %34, %41 : vector<8x1xf32>
    %cst_14 = arith.constant 8.000000e+00 : f32
    %43 = vector.broadcast %cst_14 : f32 to vector<8x1xf32>
    %44 = arith.mulf %43, %29 : vector<8x1xf32>
    %cst_15 = arith.constant 5.000000e-01 : f32
    %45 = vector.broadcast %cst_15 : f32 to vector<8x1xf32>
    %46 = arith.mulf %45, %42 : vector<8x1xf32>
    %47 = arith.addf %44, %46 : vector<8x1xf32>
    %c0_16 = arith.constant 0 : index
    %c0_17 = arith.constant 0 : index
    %48 = vector.load %arg4[%c0_16, %c0_17] : memref<8x1xf32, #tpu.memory_space<vmem>>, vector<8x1xf32>
    tpu.vector_store %arg4[%c0_16, %c0_17], %47 {strides = array<i32>} : memref<8x1xf32, #tpu.memory_space<vmem>>, vector<8x1xf32>,
    return
  }
  func.func @transform_0(%arg0: i32) -> (i32, i32) {
    %c0_i32 = arith.constant 0 : i32
    %c0_i32_0 = arith.constant 0 : i32
    return %arg0, %c0_i32 : i32, i32
  }
  func.func @transform_1(%arg0: i32) -> (i32, i32) {
    %c0_i32 = arith.constant 0 : i32
    %c0_i32_0 = arith.constant 0 : i32
    return %arg0, %c0_i32 : i32, i32
  }
  func.func @transform_2(%arg0: i32) -> (i32, i32) {
    %c0_i32 = arith.constant 0 : i32
    %c0_i32_0 = arith.constant 0 : i32
    return %arg0, %c0_i32 : i32, i32
  }
  func.func @transform_3(%arg0: i32) -> (i32, i32) {
    %c0_i32 = arith.constant 0 : i32
    %c0_i32_0 = arith.constant 0 : i32
    return %arg0, %c0_i32 : i32, i32
  }
}

</mosaic_0001>

<llo_original>
// kernel: tpu_custom_call.1
$region0: #{tpu_custom_call.1}
  #allocation0 [shape = 'u32[]', space=smem, size = 0x4, offset = 0x4, fixed_abs, tag = 'smem constant byte address 0x4 - core index']
  #allocation1 [shape = 'u32[144,128]{1,0:T(1,128)}', space=vmem, size = 0x12000, scoped, tag = 'internal scratch']
  %s0 = inlined_call_operand.vmem [shape: f32[8,32], index: 0, kind: input, shape index: {}]
  %s1 = inlined_call_operand.hbm [shape: f32[8,32], index: 1, kind: input, shape index: {}]
  %s2 = inlined_call_operand.vmem [shape: s32[8,1], index: 2, kind: input, shape index: {}]
  %s3 = inlined_call_operand.vmem [shape: f32[8,1], index: 3, kind: output, shape index: {}]
  %s4 = sld [smem:[#allocation0]]
  $region26: #{tpu_custom_call.1} parent=0
    _
  %s6 = ssub.s32 1, %s4
  %s7 = scalar_select 0, %s6, %s4
  $region1: #{tpu_custom_call.1} parent=0
    #allocation2 [shape = 'u8[4096]{0}', space=vmem, size = 0x1000, scoped, tag = 'input window, operand 1, single buffered']
    #allocation3 [shape = 's32[1]{0}', space=sflag, size = 0x4, scoped, tag = 'scoped memory for tpu_custom_call.1']
    %8 = vsyncpa [#allocation3], 0
    // Predicated region
    $region2: #{tpu_custom_call.1} parent=1 // pred_check
      _
    $region3: #{tpu_custom_call.1} parent=1 // pred_check_branch
      %10 = sbr.rel (0) target = $region5
    $region4: #{tpu_custom_call.1} parent=1 // pred_region
      _
    $region5: #{tpu_custom_call.1} parent=1 // pred_fallthru
      _
    // Predicated region
    $region6: #{tpu_custom_call.1} parent=1 // pred_check
      _
    $region7: #{tpu_custom_call.1} parent=1 // pred_check_branch
      %12 = sbr.rel (0) target = $region9
    $region8: #{tpu_custom_call.1} parent=1 // pred_region
      %s14 = ssub.s32 128, 128
      %15 = vsyncadd [#allocation3], %s14
      %s17 = sshll.u32 [#allocation2], 4
      %s18 = int_to_ptr.vmem [resolvable:$true] %s17
      %20 = dma.hbm_to_vmem [thread:$0]  %s1, 128, %s18, [#allocation3]
    $region9: #{tpu_custom_call.1} parent=1 // pred_fallthru
      _
    // Predicated region
    $region10: #{tpu_custom_call.1} parent=1 // pred_check
      _
    $region11: #{tpu_custom_call.1} parent=1 // pred_check_branch
      %22 = sbr.rel (0) target = $region13
    $region12: #{tpu_custom_call.1} parent=1 // pred_region
      _
    $region13: #{tpu_custom_call.1} parent=1 // pred_fallthru
      _
    // Predicated region
    $region14: #{tpu_custom_call.1} parent=1 // pred_check
      _
    $region15: #{tpu_custom_call.1} parent=1 // pred_check_branch
      %24 = sbr.rel (0) target = $region17
    $region16: #{tpu_custom_call.1} parent=1 // pred_region
      %25 = dma.done [#allocation3], 128
    $region17: #{tpu_custom_call.1} parent=1 // pred_fallthru
      _
    %v26 = vld [vmem:[%s0] sm:$0xff]
    %v27 = vld [vmem:[#allocation2] sm:$0xff]
    %v28 = vld [vmem:[%s2] sm:$0xff]
    %vm29 = vcmask 261120
    %v30 = vsel %vm29, %v26, -inf
    %31 = vmax.xlane.f32.xlu0 %v30
    %v32 = vpop.xlane.xlu0 %31
    %v33 = vsub.f32 %v26, %v32
    %v34 = vmul.f32 %v33, 0.25
    %v35 = vmul.f32 %v34, 1.442695
    %v36 = vpow.pop %v35
    %v37 = vsel %vm29, %v36, 0.0
    %38 = vadd.xlane.f32.xlu0 %v37
    %v39 = vpop.xlane.xlu0 %38
    %v40 = vlog2.pop %v39
    %v41 = vmul.f32 %v40, 0.6931472
    %v42 = vsel %vm29, %v27, -inf
    %43 = vmax.xlane.f32.xlu0 %v42
    %v44 = vpop.xlane.xlu0 %43
    %v45 = vsub.f32 %v27, %v44
    %v46 = vmul.f32 %v45, 0.25
    %v47 = vmul.f32 %v46, 1.442695
    %v48 = vpow.pop %v47
    %v49 = vsel %vm29, %v48, 0.0
    %50 = vadd.xlane.f32.xlu0 %v49
    %v51 = vpop.xlane.xlu0 %50
    %v52 = vlog2.pop %v51
    %v53 = vmul.f32 %v52, 0.6931472
    %v54 = vsub.f32 %v46, %v34
    %v55 = vmul.f32 %v48, %v54
    %v56 = vsel %vm29, %v55, 0.0
    %57 = vadd.xlane.f32.xlu0 %v56
    %v58 = vpop.xlane.xlu0 %57
    %v59 = vrcp.pop %v51
    %v60 = vmul.f32 %v58, %v59
    %v61 = vsub.f32 %v60, %v53
    %v62 = vadd.f32 %v61, %v41
    %v63 = vmul.f32 %v36, %v36
    %v64 = vmul.f32 %v63, %v63
    %v65 = vsel %vm29, %v64, 0.0
    %66 = vadd.xlane.f32.xlu0 %v65
    %v67 = vpop.xlane.xlu0 %66
    %v68 = vlog2.pop %v67
    %v69 = vmul.f32 %v68, 0.6931472
    %v70 = vlaneseq
    %v71 = vand.u32 %v70, 127
    %72 = vset.pattern.permute.xlu0 0
    %73 = vperm.xlu0 %72, %v28
    %v74 = vpop.permute.xlu0 %73
    %vm75 = vcmp.eq.s32.totalorder %v71, %v74
    %v76 = vsel %vm75, %v33, 0.0
    %v77 = vsel %vm29, %v76, 0.0
    %78 = vadd.xlane.f32.xlu0 %v77
    %v79 = vpop.xlane.xlu0 %78
    %v80 = vsub.f32 %v69, %v79
    %v81 = vmul.f32 %v62, 8.0
    %v82 = vmul.f32 %v80, 0.5
    %v83 = vadd.f32 %v81, %v82
    %vm84 = vcmask 7168
    %85 = vst.msk [vmem:[%s3] sm:$0xff] %vm84, %v83
    // Predicated region
    $region18: #{tpu_custom_call.1} parent=1 // pred_check
      _
    $region19: #{tpu_custom_call.1} parent=1 // pred_check_branch
      %87 = sbr.rel (0) target = $region21
    $region20: #{tpu_custom_call.1} parent=1 // pred_region
      _
    $region21: #{tpu_custom_call.1} parent=1 // pred_fallthru
      _
    // Predicated region
    $region22: #{tpu_custom_call.1} parent=1 // pred_check
      _
    $region23: #{tpu_custom_call.1} parent=1 // pred_check_branch
      %89 = sbr.rel (0) target = $region25
    $region24: #{tpu_custom_call.1} parent=1 // pred_region
      _
    $region25: #{tpu_custom_call.1} parent=1 // pred_fallthru
      _
    %90 = vsyncpa [#allocation3], 1

</llo_original>
